<compile_context>
chip_gen: v5e
topology: v5e:2x2
jax: 0.10.0
libtpu: 0.0.40
codegen_flags: <defaults>
</compile_context>

<pallas_src>
import functools

import jax
import jax.numpy as jnp
import numpy as np
from jax.experimental import pallas as pl
from jax.experimental.pallas import tpu as pltpu


def _round_up(x, m):
    return (x + m - 1) // m * m


def _deform_agg_kernel(x_ref, q_ref, wa_ref, ba_ref, rwo_ref, bo_ref, o_ref,
                       *, G, P, C):
    # Per grid step:
    #   x_ref  : (TN, G*P*C)  lane-dense sampled-feature slab
    #   q_ref  : (TN, D)
    #   wa_ref : (D, G*P)     attn_weights.weight (stored (in, out))
    #   ba_ref : (1, G*P)
    #   rwo_ref: (G*P*C, D)   out_proj.weight with sum-over-P folded in
    #   bo_ref : (1, D)
    GP = G * P
    F = GP * C
    cdtype = x_ref.dtype

    q = q_ref[...]

    # Attention logits on the MXU, f32 accumulation: (TN, GP).
    logits = jnp.dot(q, wa_ref[...], preferred_element_type=jnp.float32)
    logits = logits + ba_ref[...].astype(jnp.float32)

    # ---- full-width per-group softmax over the P points --------------------
    # Subtracting the per-row *global* max is a constant within each group,
    # so the per-group softmax is unchanged; max/exp run full lane width
    # instead of (TN, P) masked slices (no concatenate / relayout).
    m = jnp.max(logits, axis=-1, keepdims=True)
    e = jnp.exp(logits - m)                                          # (TN, GP)

    # Group sums via tiny 0/1 membership matmuls, built in-kernel from iota
    # comparisons (no DMA, no integer division).
    pi = jax.lax.broadcasted_iota(jnp.int32, (GP, G), 0)
    gi = jax.lax.broadcasted_iota(jnp.int32, (GP, G), 1)
    A = ((pi >= gi * P) & (pi < (gi + 1) * P)).astype(jnp.float32)   # (GP, G)
    gj = jax.lax.broadcasted_iota(jnp.int32, (G, GP), 0)
    pj = jax.lax.broadcasted_iota(jnp.int32, (G, GP), 1)
    AT = ((pj >= gj * P) & (pj < (gj + 1) * P)).astype(jnp.float32)  # (G, GP)

    gsum = jnp.dot(e, A, preferred_element_type=jnp.float32)         # (TN, G)
    # EUP reciprocal on only G lanes, broadcast back to GP lanes via AT (0/1).
    rden = jnp.dot(pl.reciprocal(gsum, approx=True), AT,
                   preferred_element_type=jnp.float32)               # (TN, GP)
    w = e * rden                                                     # (TN, GP)

    # ---- broadcast each (group, point) weight over its C channels ----------
    # E[i, j] = 1 iff j // C == i  (exact 0/1 in any dtype, built in-kernel).
    ri = jax.lax.broadcasted_iota(jnp.int32, (GP, F), 0)
    cj = jax.lax.broadcasted_iota(jnp.int32, (GP, F), 1)
    E = ((cj >= ri * C) & (cj < (ri + 1) * C)).astype(cdtype)        # (GP, F)
    w_exp = jnp.dot(w.astype(cdtype), E,
                    preferred_element_type=jnp.float32).astype(cdtype)

    # Weighted features in the input dtype, then fused (sum-over-P + out_proj)
    # MXU matmul with f32 accumulation.
    weighted = x_ref[...] * w_exp                                    # (TN, F)
    proj = jnp.dot(weighted, rwo_ref[...],
                   preferred_element_type=jnp.float32)               # (TN, D)
    proj = proj + bo_ref[...].astype(jnp.float32)

    # Residual add.  (If D < 128 the output store is lane-masked; for real
    # SparseBEV D = 256 it is lane-dense.)
    o_ref[...] = (q.astype(jnp.float32) + proj).astype(o_ref.dtype)


def deform_aggregation(x, query, wa, ba, wo, bo, *, tile_n=None):
    """DeformAggregation forward.

    x     : (B, Q, G, P, C) sampled features
    query : (B, Q, D)
    wa,ba : attn_weights Linear, wa stored (D, G*P)   (y = q @ wa + ba)
    wo,bo : out_proj Linear,     wo stored (G*C, D)
    returns (B, Q, D)
    """
    B, Q, G, P, C = x.shape
    D = query.shape[-1]
    N = B * Q
    GP, F = G * P, G * P * C

    cdtype = x.dtype
    xf = x.reshape(N, F)
    qf = query.reshape(N, D)
    ba2 = ba.reshape(1, GP)
    bo2 = bo.reshape(1, D)
    # out_proj weight with the sum-over-P reduction folded in:
    #   Rwo[(g*P + p)*C + c, d] = wo[g*C + c, d]
    # TODO(synk): cache Rwo across calls when the module weights are static.
    Rwo = jnp.broadcast_to(wo.reshape(G, 1, C, D).astype(cdtype),
                           (G, P, C, D)).reshape(F, D)

    # ---- generation-aware tile size / VMEM budget ---------------------------
    try:
        vmem_cap = int(getattr(pltpu.get_tpu_info(), "vmem_capacity_bytes",
                               64 * 2 ** 20))
    except Exception:  # pragma: no cover - keep a safe default on odd setups
        vmem_cap = 64 * 2 ** 20          # conservative: v7x per-TensorCore

    in_sz = jnp.dtype(cdtype).itemsize
    q_sz = jnp.dtype(query.dtype).itemsize
    # Per-row VMEM: double-buffered x/q/out tiles + the two wide intermediates
    # (w_exp, weighted; counted at f32 width to be safe) + small softmax temps.
    per_row = (2 * F * in_sz + 4 * D * q_sz + 2 * F * 4 + 16 * GP * 4)
    budget = int(vmem_cap * 0.4)
    cap = max(8, min(budget // max(per_row, 1), 1024))
    if tile_n is not None:
        cap = max(8, min(cap, _round_up(int(tile_n), 8)))
    Npad8 = _round_up(N, 8)
    cap = max(8, (min(cap, Npad8) // 8) * 8)

    # Prefer a tile that divides the (8-padded) row count so the dominant
    # tensor x never needs an extra HBM pad/copy pass.
    tile = 8
    for cand in range(8, cap + 1, 8):
        if Npad8 % cand == 0:
            tile = cand
    if tile >= max(8, cap // 2):
        tile_rows, Npad = tile, Npad8
    else:
        tile_rows, Npad = cap, _round_up(N, cap)
    if Npad != N:
        # TODO(synk): mask the ragged tail in-kernel instead of copying x.
        xf = jnp.pad(xf, ((0, Npad - N), (0, 0)))
        qf = jnp.pad(qf, ((0, Npad - N), (0, 0)))
    grid = (Npad // tile_rows,)

    # VMEM estimate incl. resident weights; keep the limit below physical
    # VMEM on every generation (v7x = 64 MiB per TensorCore).
    resident = (D * GP + GP + F * D + D) * max(in_sz, q_sz) * 2
    est_vmem = tile_rows * per_row + resident + (1 << 20)
    vmem_limit = int(min(vmem_cap * 0.85, max(est_vmem * 1.5, 32 * 2 ** 20)))
    vmem_limit = int(min(max(vmem_limit, est_vmem), vmem_cap * 0.85))

    kernel = functools.partial(_deform_agg_kernel, G=G, P=P, C=C)

    flops_per_row = 2 * (D * GP + GP * G + G * GP + GP * F + F * D)
    cost = pl.CostEstimate(
        flops=Npad * flops_per_row + 4 * Npad * (F + GP + D),
        transcendentals=Npad * (GP + G),
        bytes_accessed=(Npad * F * in_sz + 2 * Npad * D * q_sz
                        + (D * GP + GP + F * D + D) * in_sz))

    out = pl.pallas_call(
        kernel,
        out_shape=jax.ShapeDtypeStruct((Npad, D), query.dtype),
        grid=grid,
        in_specs=[
            pl.BlockSpec((tile_rows, F), lambda i: (i, 0)),
            pl.BlockSpec((tile_rows, D), lambda i: (i, 0)),
            pl.BlockSpec((D, GP), lambda i: (0, 0)),   # resident weights
            pl.BlockSpec((1, GP), lambda i: (0, 0)),
            pl.BlockSpec((F, D), lambda i: (0, 0)),
            pl.BlockSpec((1, D), lambda i: (0, 0)),
        ],
        out_specs=pl.BlockSpec((tile_rows, D), lambda i: (i, 0)),
        compiler_params=pltpu.CompilerParams(
            dimension_semantics=("parallel",),
            vmem_limit_bytes=vmem_limit),
        cost_estimate=cost,
    )(xf, qf, wa, ba2, Rwo, bo2)
    return out[:N].reshape(B, Q, D)


def _reference(x, query, wa, ba, wo, bo):
    B, Q, G, P, C = x.shape
    logits = (query @ wa + ba).reshape(B, Q, G, P, 1)
    w = jax.nn.softmax(logits, axis=-2)
    agg = jnp.sum(x * w, axis=-2).reshape(B, Q, G * C)
    return query + agg @ wo + bo


if __name__ == "__main__":
    # Module hyper-params (small, consistent with the forward's assertions):
    #   in_dim=32, n_groups=2, in_points=4 -> eff_in_dim = C = 16
    #   query_dim = in_dim = 32; G*P*C = 128 (exactly one lane row)
    B, Qn = 2, 128
    in_dim, n_groups, in_points = 32, 2, 4
    query_dim = in_dim
    C = in_dim // n_groups   # eff_in_dim

    key = jax.random.PRNGKey(0)
    kx, kq, k1, k2, k3, k4 = jax.random.split(key, 6)

    x = jax.random.normal(kx, (B, Qn, n_groups, in_points, C), dtype=jnp.float32)
    query = jax.random.normal(kq, (B, Qn, query_dim), dtype=jnp.float32)

    # Deterministic parameter init (Linear weights stored as (in, out)).
    wa = 0.05 * jax.random.normal(k1, (query_dim, n_groups * in_points), jnp.float32)
    ba = 0.05 * jax.random.normal(k2, (n_groups * in_points,), jnp.float32)
    wo = 0.05 * jax.random.normal(k3, (n_groups * C, query_dim), jnp.float32)
    bo = 0.05 * jax.random.normal(k4, (query_dim,), jnp.float32)

    # tile_n=64 -> grid=(4,): at least two pipelined steps per TensorCore on
    # dual-TC parts (v7x); per-step overhead is negligible at this size on
    # single-TC generations.
    out = deform_aggregation(x, query, wa, ba, wo, bo, tile_n=64)
    out = jax.block_until_ready(out)

    ref = _reference(x, query, wa, ba, wo, bo)
    # Tolerance relaxed slightly vs. pure-f32 because of the EUP approximate
    # reciprocal used for the softmax denominator.
    np.testing.assert_allclose(np.asarray(out), np.asarray(ref),
                               rtol=2e-3, atol=2e-3)

    print("KERNEL_OK")
</pallas_src>

<mosaic_0001>
module attributes {stable_mosaic.version = 11 : i64} {
  func.func @_deform_agg_kernel(%arg0: i32, %arg1: memref<64x128xf32, #tpu.memory_space<vmem>>, %arg2: memref<64x32xf32, #tpu.memory_space<vmem>>, %arg3: memref<32x8xf32, #tpu.memory_space<vmem>>, %arg4: memref<1x8xf32, #tpu.memory_space<vmem>>, %arg5: memref<128x32xf32, #tpu.memory_space<vmem>>, %arg6: memref<1x32xf32, #tpu.memory_space<vmem>>, %arg7: memref<64x32xf32, #tpu.memory_space<vmem>>) attributes {dimension_semantics = [#tpu.dimension_semantics<parallel>], iteration_bounds = array<i64: 4>, scalar_prefetch = 0 : i64, scratch_operands = 0 : i64, tpu.core_type = #tpu.core_type<tc>, window_params = [{transform_indices = @transform_0, window_bounds = array<i64: 64, 128>}, {transform_indices = @transform_1, window_bounds = array<i64: 64, 32>}, {pipeline_mode = #tpu.pipeline_mode<synchronous>, transform_indices = @transform_2, window_bounds = array<i64: 32, 8>}, {pipeline_mode = #tpu.pipeline_mode<synchronous>, transform_indices = @transform_3, window_bounds = array<i64: 1, 8>}, {pipeline_mode = #tpu.pipeline_mode<synchronous>, transform_indices = @transform_4, window_bounds = array<i64: 128, 32>}, {pipeline_mode = #tpu.pipeline_mode<synchronous>, transform_indices = @transform_5, window_bounds = array<i64: 1, 32>}, {transform_indices = @transform_6, window_bounds = array<i64: 64, 32>}]} {
    %c0 = arith.constant 0 : index
    %c0_0 = arith.constant 0 : index
    %0 = vector.load %arg2[%c0, %c0_0] : memref<64x32xf32, #tpu.memory_space<vmem>>, vector<64x32xf32>
    %c0_1 = arith.constant 0 : index
    %c0_2 = arith.constant 0 : index
    %1 = vector.load %arg3[%c0_1, %c0_2] : memref<32x8xf32, #tpu.memory_space<vmem>>, vector<32x8xf32>
    %cst = arith.constant dense<0.000000e+00> : vector<64x8xf32>
    %2 = tpu.matmul %0, %1, %cst {dimension_numbers = #tpu.dot_dimension_numbers<[1], [0], [0], [1], [0, 0, 1, 1], [], []>} : vector<64x32xf32>, vector<32x8xf32>, vector<64x8xf32> -> vector<64x8xf32>
    %c0_3 = arith.constant 0 : index
    %c0_4 = arith.constant 0 : index
    %3 = vector.load %arg4[%c0_3, %c0_4] : memref<1x8xf32, #tpu.memory_space<vmem>>, vector<1x8xf32>
    %4 = vector.broadcast %3 : vector<1x8xf32> to vector<64x8xf32>
    %5 = arith.addf %2, %4 : vector<64x8xf32>
    %cst_5 = arith.constant dense<0xFF800000> : vector<64xf32>
    %6 = vector.multi_reduction <maximumf>, %5, %cst_5 [1] : vector<64x8xf32> to vector<64xf32>
    %7 = vector.shape_cast %6 : vector<64xf32> to vector<64x1xf32>
    %8 = vector.broadcast %7 : vector<64x1xf32> to vector<64x8xf32>
    %9 = arith.subf %5, %8 : vector<64x8xf32>
    %10 = math.exp %9 : vector<64x8xf32>
    %11 = tpu.iota {dimensions = array<i32: 0>} : vector<8x2xi32>
    %12 = tpu.iota {dimensions = array<i32: 1>} : vector<8x2xi32>
    %c4_i32 = arith.constant 4 : i32
    %13 = vector.broadcast %c4_i32 : i32 to vector<8x2xi32>
    %14 = arith.muli %12, %13 : vector<8x2xi32>
    %15 = arith.cmpi sge, %11, %14 : vector<8x2xi32>
    %c1_i32 = arith.constant 1 : i32
    %16 = vector.broadcast %c1_i32 : i32 to vector<8x2xi32>
    %17 = arith.addi %12, %16 : vector<8x2xi32>
    %c4_i32_6 = arith.constant 4 : i32
    %18 = vector.broadcast %c4_i32_6 : i32 to vector<8x2xi32>
    %19 = arith.muli %17, %18 : vector<8x2xi32>
    %20 = arith.cmpi slt, %11, %19 : vector<8x2xi32>
    %21 = arith.andi %15, %20 : vector<8x2xi1>
    %22 = arith.extui %21 : vector<8x2xi1> to vector<8x2xi32>
    %23 = arith.sitofp %22 : vector<8x2xi32> to vector<8x2xf32>
    %24 = tpu.iota {dimensions = array<i32: 0>} : vector<2x8xi32>
    %25 = tpu.iota {dimensions = array<i32: 1>} : vector<2x8xi32>
    %c4_i32_7 = arith.constant 4 : i32
    %26 = vector.broadcast %c4_i32_7 : i32 to vector<2x8xi32>
    %27 = arith.muli %24, %26 : vector<2x8xi32>
    %28 = arith.cmpi sge, %25, %27 : vector<2x8xi32>
    %c1_i32_8 = arith.constant 1 : i32
    %29 = vector.broadcast %c1_i32_8 : i32 to vector<2x8xi32>
    %30 = arith.addi %24, %29 : vector<2x8xi32>
    %c4_i32_9 = arith.constant 4 : i32
    %31 = vector.broadcast %c4_i32_9 : i32 to vector<2x8xi32>
    %32 = arith.muli %30, %31 : vector<2x8xi32>
    %33 = arith.cmpi slt, %25, %32 : vector<2x8xi32>
    %34 = arith.andi %28, %33 : vector<2x8xi1>
    %35 = arith.extui %34 : vector<2x8xi1> to vector<2x8xi32>
    %36 = arith.sitofp %35 : vector<2x8xi32> to vector<2x8xf32>
    %cst_10 = arith.constant dense<0.000000e+00> : vector<64x2xf32>
    %37 = tpu.matmul %10, %23, %cst_10 {dimension_numbers = #tpu.dot_dimension_numbers<[1], [0], [0], [1], [0, 0, 1, 1], [], []>} : vector<64x8xf32>, vector<8x2xf32>, vector<64x2xf32> -> vector<64x2xf32>
    %38 = tpu.reciprocal %37 {approx = true} : vector<64x2xf32> -> vector<64x2xf32>
    %cst_11 = arith.constant dense<0.000000e+00> : vector<64x8xf32>
    %39 = tpu.matmul %38, %36, %cst_11 {dimension_numbers = #tpu.dot_dimension_numbers<[1], [0], [0], [1], [0, 0, 1, 1], [], []>} : vector<64x2xf32>, vector<2x8xf32>, vector<64x8xf32> -> vector<64x8xf32>
    %40 = arith.mulf %10, %39 : vector<64x8xf32>
    %41 = tpu.iota {dimensions = array<i32: 0>} : vector<8x128xi32>
    %42 = tpu.iota {dimensions = array<i32: 1>} : vector<8x128xi32>
    %c16_i32 = arith.constant 16 : i32
    %43 = vector.broadcast %c16_i32 : i32 to vector<8x128xi32>
    %44 = arith.muli %41, %43 : vector<8x128xi32>
    %45 = arith.cmpi sge, %42, %44 : vector<8x128xi32>
    %c1_i32_12 = arith.constant 1 : i32
    %46 = vector.broadcast %c1_i32_12 : i32 to vector<8x128xi32>
    %47 = arith.addi %41, %46 : vector<8x128xi32>
    %c16_i32_13 = arith.constant 16 : i32
    %48 = vector.broadcast %c16_i32_13 : i32 to vector<8x128xi32>
    %49 = arith.muli %47, %48 : vector<8x128xi32>
    %50 = arith.cmpi slt, %42, %49 : vector<8x128xi32>
    %51 = arith.andi %45, %50 : vector<8x128xi1>
    %52 = arith.extui %51 : vector<8x128xi1> to vector<8x128xi32>
    %53 = arith.sitofp %52 : vector<8x128xi32> to vector<8x128xf32>
    %cst_14 = arith.constant dense<0.000000e+00> : vector<64x128xf32>
    %54 = tpu.matmul %40, %53, %cst_14 {dimension_numbers = #tpu.dot_dimension_numbers<[1], [0], [0], [1], [0, 0, 1, 1], [], []>} : vector<64x8xf32>, vector<8x128xf32>, vector<64x128xf32> -> vector<64x128xf32>
    %c0_15 = arith.constant 0 : index
    %c0_16 = arith.constant 0 : index
    %55 = vector.load %arg1[%c0_15, %c0_16] : memref<64x128xf32, #tpu.memory_space<vmem>>, vector<64x128xf32>
    %56 = arith.mulf %55, %54 : vector<64x128xf32>
    %c0_17 = arith.constant 0 : index
    %c0_18 = arith.constant 0 : index
    %57 = vector.load %arg5[%c0_17, %c0_18] : memref<128x32xf32, #tpu.memory_space<vmem>>, vector<128x32xf32>
    %cst_19 = arith.constant dense<0.000000e+00> : vector<64x32xf32>
    %58 = tpu.matmul %56, %57, %cst_19 {dimension_numbers = #tpu.dot_dimension_numbers<[1], [0], [0], [1], [0, 0, 1, 1], [], []>} : vector<64x128xf32>, vector<128x32xf32>, vector<64x32xf32> -> vector<64x32xf32>
    %c0_20 = arith.constant 0 : index
    %c0_21 = arith.constant 0 : index
    %59 = vector.load %arg6[%c0_20, %c0_21] : memref<1x32xf32, #tpu.memory_space<vmem>>, vector<1x32xf32>
    %60 = vector.broadcast %59 : vector<1x32xf32> to vector<64x32xf32>
    %61 = arith.addf %58, %60 : vector<64x32xf32>
    %62 = arith.addf %0, %61 : vector<64x32xf32>
    %c0_22 = arith.constant 0 : index
    %c0_23 = arith.constant 0 : index
    %63 = vector.load %arg7[%c0_22, %c0_23] : memref<64x32xf32, #tpu.memory_space<vmem>>, vector<64x32xf32>
    tpu.vector_store %arg7[%c0_22, %c0_23], %62 {strides = array<i32>} : memref<64x32xf32, #tpu.memory_space<vmem>>, vector<64x32xf32>,
    return
  }
  func.func @transform_0(%arg0: i32) -> (i32, i32) {
    %c0_i32 = arith.constant 0 : i32
    %c0_i32_0 = arith.constant 0 : i32
    return %arg0, %c0_i32 : i32, i32
  }
  func.func @transform_1(%arg0: i32) -> (i32, i32) {
    %c0_i32 = arith.constant 0 : i32
    %c0_i32_0 = arith.constant 0 : i32
    return %arg0, %c0_i32 : i32, i32
  }
  func.func @transform_2(%arg0: i32) -> (i32, i32) {
    %c0_i32 = arith.constant 0 : i32
    %c0_i32_0 = arith.constant 0 : i32
    %c0_i32_1 = arith.constant 0 : i32
    return %c0_i32, %c0_i32_0 : i32, i32
  }
  func.func @transform_3(%arg0: i32) -> (i32, i32) {
    %c0_i32 = arith.constant 0 : i32
    %c0_i32_0 = arith.constant 0 : i32
    %c0_i32_1 = arith.constant 0 : i32
    return %c0_i32, %c0_i32_0 : i32, i32
  }
  func.func @transform_4(%arg0: i32) -> (i32, i32) {
    %c0_i32 = arith.constant 0 : i32
    %c0_i32_0 = arith.constant 0 : i32
    %c0_i32_1 = arith.constant 0 : i32
    return %c0_i32, %c0_i32_0 : i32, i32
  }
  func.func @transform_5(%arg0: i32) -> (i32, i32) {
    %c0_i32 = arith.constant 0 : i32
    %c0_i32_0 = arith.constant 0 : i32
    %c0_i32_1 = arith.constant 0 : i32
    return %c0_i32, %c0_i32_0 : i32, i32
  }
  func.func @transform_6(%arg0: i32) -> (i32, i32) {
    %c0_i32 = arith.constant 0 : i32
    %c0_i32_0 = arith.constant 0 : i32
    return %arg0, %c0_i32 : i32, i32
  }
}

</mosaic_0001>

<llo_original>
// kernel: tpu_custom_call.1
$region0: #{tpu_custom_call.1}
  #allocation0 [shape = 'u32[]', space=smem, size = 0x4, offset = 0x4, fixed_abs, tag = 'smem constant byte address 0x4 - core index']
  #allocation1 [shape = 'u32[72,128]{1,0:T(1,128)}', space=vmem, size = 0x9000, scoped, tag = 'internal scratch']
  %s0 = inlined_call_operand.vmem [shape: f32[256,128], index: 0, kind: input, shape index: {}]
  %s1 = inlined_call_operand.vmem [shape: f32[256,32], index: 1, kind: input, shape index: {}]
  %s2 = inlined_call_operand.vmem [shape: f32[32,8], index: 2, kind: input, shape index: {}]
  %s3 = inlined_call_operand.vmem [shape: f32[1,8], index: 3, kind: input, shape index: {}]
  %s4 = inlined_call_operand.vmem [shape: f32[128,32], index: 4, kind: input, shape index: {}]
  %s5 = inlined_call_operand.vmem [shape: f32[1,32], index: 5, kind: input, shape index: {}]
  %s6 = inlined_call_operand.vmem [shape: f32[256,32], index: 6, kind: output, shape index: {}]
  %s7 = sld [smem:[#allocation0]]
  $region57: #{tpu_custom_call.1} parent=0
    _
  %s9 = ssub.s32 1, %s7
  %s10 = scalar_select 0, %s9, %s7
  loop: start=0, step=1, limit=6
  $region2: #{tpu_custom_call.1} parent=0 // loop_pre_header
    _
  $region3: #{tpu_custom_call.1} parent=0 // loop_header
    %s12 = sphi 0, %s16
    %p13 = scmp.ge.s32.totalorder %s12, 6
    %s22 = sphi 0, %s24
    %s25 = sphi 0, %s22
    %s26 = sphi 0, %s25
    %s42 = sphi 0, %s26
    %s48 = sphi 0, %s50
    %s51 = sphi 0, %s48
    %s52 = sphi 0, %s51
    %s68 = sphi 0, %s52
    %s72 = sphi 0, %s72
    %s74 = sphi 0, %s72
    %s75 = sphi 0, %s74
    %s89 = sphi 0, %s75
    %s93 = sphi 0, %s93
    %s95 = sphi 0, %s93
    %s96 = sphi 0, %s95
    %s110 = sphi 0, %s96
    %s114 = sphi 0, %s114
    %s116 = sphi 0, %s114
    %s117 = sphi 0, %s116
    %s131 = sphi 0, %s117
    %s135 = sphi 0, %s135
    %s137 = sphi 0, %s135
    %s138 = sphi 0, %s137
    %s152 = sphi 0, %s138
    %s158 = sphi 0, %s160
    %s161 = sphi 0, %s158
    %s162 = sphi 0, %s161
    %s178 = sphi 0, %s162
  $region4: #{tpu_custom_call.1} parent=0 // loop_header_branch
    %15 = sbr.rel (%p13) target = $region8
  $region5: #{tpu_custom_call.1} parent=0 // loop_body
    %s17 = ssub.s32 %s12, 1
    %s18 = ssub.s32 %s12, 2
    %s19 = sadd.s32 %s12, 1
    %s20 = ssub.s32 %s12, %s19
    %p21 = scmp.eq.s32.totalorder %s20, 0
    %s23 = sadd.s32 %s22, 1
    %s24 = scalar_select %p21, %s22, %s23
    %p27 = pneg %p21
    %p28 = scmp.eq.s32.totalorder %s12, 3
    %p29 = por %p27, %p28
    %p30 = scmp.ne.s32.totalorder %s22, %s25
    %p31 = scmp.eq.s32.totalorder %s12, 0
    %p32 = por %p30, %p31
    %p33 = scmp.ne.s32.totalorder %s22, %s25
    %p34 = scmp.eq.s32.totalorder %s17, 3
    %p35 = por %p33, %p34
    %p36 = scmp.ne.s32.totalorder %s25, %s26
    %p37 = scmp.eq.s32.totalorder %s17, 0
    %p38 = por %p36, %p37
    %p39 = scmp.ne.s32.totalorder %s25, %s26
    %p40 = scmp.eq.s32.totalorder %s18, 3
    %p41 = por %p39, %p40
    %p43 = scmp.ne.s32.totalorder %s26, %s42
    %p44 = scmp.eq.s32.totalorder %s18, 0
    %p45 = por %p43, %p44
    %s46 = ssub.s32 %s12, %s19
    %p47 = scmp.eq.s32.totalorder %s46, 0
    %s49 = sadd.s32 %s48, 1
    %s50 = scalar_select %p47, %s48, %s49
    %p53 = pneg %p47
    %p54 = scmp.eq.s32.totalorder %s12, 3
    %p55 = por %p53, %p54
    %p56 = scmp.ne.s32.totalorder %s48, %s51
    %p57 = scmp.eq.s32.totalorder %s12, 0
    %p58 = por %p56, %p57
    %p59 = scmp.ne.s32.totalorder %s48, %s51
    %p60 = scmp.eq.s32.totalorder %s17, 3
    %p61 = por %p59, %p60
    %p62 = scmp.ne.s32.totalorder %s51, %s52
    %p63 = scmp.eq.s32.totalorder %s17, 0
    %p64 = por %p62, %p63
    %p65 = scmp.ne.s32.totalorder %s51, %s52
    %p66 = scmp.eq.s32.totalorder %s18, 3
    %p67 = por %p65, %p66
    %p69 = scmp.ne.s32.totalorder %s52, %s68
    %p70 = scmp.eq.s32.totalorder %s18, 0
    %p71 = por %p69, %p70
    %s73 = sadd.s32 %s72, 1
    %p76 = scmp.eq.s32.totalorder %s12, 3
    %p77 = scmp.ne.s32.totalorder %s72, %s74
    %p78 = scmp.eq.s32.totalorder %s12, 0
    %p79 = por %p77, %p78
    %p80 = scmp.ne.s32.totalorder %s72, %s74
    %p81 = scmp.eq.s32.totalorder %s17, 3
    %p82 = por %p80, %p81
    %p83 = scmp.ne.s32.totalorder %s74, %s75
    %p84 = scmp.eq.s32.totalorder %s17, 0
    %p85 = por %p83, %p84
    %p86 = scmp.ne.s32.totalorder %s74, %s75
    %p87 = scmp.eq.s32.totalorder %s18, 3
    %p88 = por %p86, %p87
    %p90 = scmp.ne.s32.totalorder %s75, %s89
    %p91 = scmp.eq.s32.totalorder %s18, 0
    %p92 = por %p90, %p91
    %s94 = sadd.s32 %s93, 1
    %p97 = scmp.eq.s32.totalorder %s12, 3
    %p98 = scmp.ne.s32.totalorder %s93, %s95
    %p99 = scmp.eq.s32.totalorder %s12, 0
    %p100 = por %p98, %p99
    %p101 = scmp.ne.s32.totalorder %s93, %s95
    %p102 = scmp.eq.s32.totalorder %s17, 3
    %p103 = por %p101, %p102
    %p104 = scmp.ne.s32.totalorder %s95, %s96
    %p105 = scmp.eq.s32.totalorder %s17, 0
    %p106 = por %p104, %p105
    %p107 = scmp.ne.s32.totalorder %s95, %s96
    %p108 = scmp.eq.s32.totalorder %s18, 3
    %p109 = por %p107, %p108
    %p111 = scmp.ne.s32.totalorder %s96, %s110
    %p112 = scmp.eq.s32.totalorder %s18, 0
    %p113 = por %p111, %p112
    %s115 = sadd.s32 %s114, 1
    %p118 = scmp.eq.s32.totalorder %s12, 3
    %p119 = scmp.ne.s32.totalorder %s114, %s116
    %p120 = scmp.eq.s32.totalorder %s12, 0
    %p121 = por %p119, %p120
    %p122 = scmp.ne.s32.totalorder %s114, %s116
    %p123 = scmp.eq.s32.totalorder %s17, 3
    %p124 = por %p122, %p123
    %p125 = scmp.ne.s32.totalorder %s116, %s117
    %p126 = scmp.eq.s32.totalorder %s17, 0
    %p127 = por %p125, %p126
    %p128 = scmp.ne.s32.totalorder %s116, %s117
    %p129 = scmp.eq.s32.totalorder %s18, 3
    %p130 = por %p128, %p129
    %p132 = scmp.ne.s32.totalorder %s117, %s131
    %p133 = scmp.eq.s32.totalorder %s18, 0
    %p134 = por %p132, %p133
    %s136 = sadd.s32 %s135, 1
    %p139 = scmp.eq.s32.totalorder %s12, 3
    %p140 = scmp.ne.s32.totalorder %s135, %s137
    %p141 = scmp.eq.s32.totalorder %s12, 0
    %p142 = por %p140, %p141
    %p143 = scmp.ne.s32.totalorder %s135, %s137
    %p144 = scmp.eq.s32.totalorder %s17, 3
    %p145 = por %p143, %p144
    %p146 = scmp.ne.s32.totalorder %s137, %s138
    %p147 = scmp.eq.s32.totalorder %s17, 0
    %p148 = por %p146, %p147
    %p149 = scmp.ne.s32.totalorder %s137, %s138
    %p150 = scmp.eq.s32.totalorder %s18, 3
    %p151 = por %p149, %p150
    %p153 = scmp.ne.s32.totalorder %s138, %s152
    %p154 = scmp.eq.s32.totalorder %s18, 0
    %p155 = por %p153, %p154
    %s156 = ssub.s32 %s12, %s19
    %p157 = scmp.eq.s32.totalorder %s156, 0
    %s159 = sadd.s32 %s158, 1
    %s160 = scalar_select %p157, %s158, %s159
    %p163 = pneg %p157
    %p164 = scmp.eq.s32.totalorder %s12, 3
    %p165 = por %p163, %p164
    %p166 = scmp.ne.s32.totalorder %s158, %s161
    %p167 = scmp.eq.s32.totalorder %s12, 0
    %p168 = por %p166, %p167
    %p169 = scmp.ne.s32.totalorder %s158, %s161
    %p170 = scmp.eq.s32.totalorder %s17, 3
    %p171 = por %p169, %p170
    %p172 = scmp.ne.s32.totalorder %s161, %s162
    %p173 = scmp.eq.s32.totalorder %s17, 0
    %p174 = por %p172, %p173
    %p175 = scmp.ne.s32.totalorder %s161, %s162
    %p176 = scmp.eq.s32.totalorder %s18, 3
    %p177 = por %p175, %p176
    %p179 = scmp.ne.s32.totalorder %s162, %s178
    %p180 = scmp.eq.s32.totalorder %s18, 0
    %p181 = por %p179, %p180
    %p182 = scmp.le.s32.totalorder 1, %s12
    %p183 = scmp.lt.s32.totalorder %s12, 5
    %p184 = pnand %p182, %p183
    %p185 = pneg %p184
    // Predicated region
    $region9: #{tpu_custom_call.1} parent=5 // pred_check
      _
    $region10: #{tpu_custom_call.1} parent=5 // pred_check_branch
      %187 = sbr.rel (%p184) target = $region12
    $region11: #{tpu_custom_call.1} parent=5 // pred_region
      %s188 = ssub.s32 %s12, 1
      // Predicated region
      $region13: #{tpu_custom_call.1} parent=11 // pred_check
        %p189 = pneg %p85
      $region14: #{tpu_custom_call.1} parent=11 // pred_check_branch
        %191 = sbr.rel (%p189) target = $region16
      $region15: #{tpu_custom_call.1} parent=11 // pred_region
        _
      $region16: #{tpu_custom_call.1} parent=11 // pred_fallthru
        _
      // Predicated region
      $region17: #{tpu_custom_call.1} parent=11 // pred_check
        %p192 = pneg %p106
      $region18: #{tpu_custom_call.1} parent=11 // pred_check_branch
        %194 = sbr.rel (%p192) target = $region20
      $region19: #{tpu_custom_call.1} parent=11 // pred_region
        _
      $region20: #{tpu_custom_call.1} parent=11 // pred_fallthru
        _
      // Predicated region
      $region21: #{tpu_custom_call.1} parent=11 // pred_check
        %p195 = pneg %p127
      $region22: #{tpu_custom_call.1} parent=11 // pred_check_branch
        %197 = sbr.rel (%p195) target = $region24
      $region23: #{tpu_custom_call.1} parent=11 // pred_region
        _
      $region24: #{tpu_custom_call.1} parent=11 // pred_fallthru
        _
      // Predicated region
      $region25: #{tpu_custom_call.1} parent=11 // pred_check
        %p198 = pneg %p148
      $region26: #{tpu_custom_call.1} parent=11 // pred_check_branch
        %200 = sbr.rel (%p198) target = $region28
      $region27: #{tpu_custom_call.1} parent=11 // pred_region
        _
      $region28: #{tpu_custom_call.1} parent=11 // pred_fallthru
        _
    $region12: #{tpu_custom_call.1} parent=5 // pred_fallthru
      _
    %p201 = scmp.lt.s32.totalorder %s12, 4
    // Predicated region
    $region29: #{tpu_custom_call.1} parent=5 // pred_check
      %p202 = pneg %p201
    $region30: #{tpu_custom_call.1} parent=5 // pred_check_branch
      %204 = sbr.rel (%p202) target = $region32
    $region31: #{tpu_custom_call.1} parent=5 // pred_region
      // Predicated region
      $region33: #{tpu_custom_call.1} parent=31 // pred_check
        %p205 = pneg %p32
      $region34: #{tpu_custom_call.1} parent=31 // pred_check_branch
        %207 = sbr.rel (%p205) target = $region36
      $region35: #{tpu_custom_call.1} parent=31 // pred_region
        %s208 = smul.u32 8, %s12
        %p209 = scmp.lt.s32.totalorder %s208, 31
        %s210 = scalar_select %p209, %s208, 31
        %s211 = smul.addr %s210, 8
        %s212 = scalar_lea.vmem %s0, %s211
        %s213 = smul.u32 8, %s12
      $region36: #{tpu_custom_call.1} parent=31 // pred_fallthru
        _
      // Predicated region
      $region37: #{tpu_custom_call.1} parent=31 // pred_check
        %p214 = pneg %p58
      $region38: #{tpu_custom_call.1} parent=31 // pred_check_branch
        %216 = sbr.rel (%p214) target = $region40
      $region39: #{tpu_custom_call.1} parent=31 // pred_region
        %s217 = smul.u32 8, %s12
        %p218 = scmp.lt.s32.totalorder %s217, 31
        %s219 = scalar_select %p218, %s217, 31
        %s220 = smul.addr %s219, 8
        %s221 = scalar_lea.vmem %s1, %s220
        %s222 = smul.u32 8, %s12
      $region40: #{tpu_custom_call.1} parent=31 // pred_fallthru
        _
    $region32: #{tpu_custom_call.1} parent=5 // pred_fallthru
      _
    %p223 = scmp.le.s32.totalorder 1, %s12
    %p224 = scmp.lt.s32.totalorder %s12, 5
    %p225 = pnand %p223, %p224
    %p226 = pneg %p225
    // Predicated region
    $region41: #{tpu_custom_call.1} parent=5 // pred_check
      _
    $region42: #{tpu_custom_call.1} parent=5 // pred_check_branch
      %228 = sbr.rel (%p225) target = $region44
    $region43: #{tpu_custom_call.1} parent=5 // pred_region
      %s229 = ssub.s32 %s12, 1
      %s230 = smul.u32 8, %s17
      %p231 = scmp.lt.s32.totalorder %s230, 31
      %s232 = scalar_select %p231, %s230, 31
      %s233 = smul.addr %s232, 8
      %s234 = scalar_lea.vmem %s0, %s233
      %p235 = pneg %p38
      %p236 = pneg %p35
      %s237 = smul.u32 8, %s17
      %p238 = scmp.lt.s32.totalorder %s237, 31
      %s239 = scalar_select %p238, %s237, 31
      %s240 = smul.addr %s239, 8
      %s241 = scalar_lea.vmem %s1, %s240
      %p242 = pneg %p64
      %p243 = pneg %p61
      %p244 = pneg %p85
      %p245 = pneg %p82
      %p246 = pneg %p106
      %p247 = pneg %p103
      %p248 = pneg %p127
      %p249 = pneg %p124
      %p250 = pneg %p148
      %p251 = pneg %p145
      %p252 = pneg %p174
      %p253 = pneg %p171
      %s254 = smul.u32 8, %s17
      %p255 = scmp.lt.s32.totalorder %s254, 31
      %s256 = scalar_select %p255, %s254, 31
      %s257 = smul.addr %s256, 8
      %s258 = scalar_lea.vmem %s6, %s257
      %s259 = smul.u32 8, %s17
      %p260 = scmp.lt.s32.totalorder %s259, 31
      %s261 = scalar_select %p260, %s259, 31
      %s262 = smul.addr %s261, 8
      %s263 = scalar_lea.vmem %s0, %s262
      %s264 = smul.u32 8, %s17
      %s265 = smul.u32 8, %s17
      %p266 = scmp.lt.s32.totalorder %s265, 31
      %s267 = scalar_select %p266, %s265, 31
      %s268 = smul.addr %s267, 8
      %s269 = scalar_lea.vmem %s1, %s268
      %s270 = smul.u32 8, %s17
      %s271 = smul.u32 8, %s17
      %p272 = scmp.lt.s32.totalorder %s271, 31
      %s273 = scalar_select %p272, %s271, 31
      %s274 = smul.addr %s273, 8
      %s275 = scalar_lea.vmem %s6, %s274
      %s276 = smul.u32 8, %s17
      %v277 = vld [vmem:[%s269] sm:$0xff]
      %v278 = vld [vmem:[%s269 + $0x8] sm:$0xff]
      %v279 = vld [vmem:[%s269 + $0x10] sm:$0xff]
      %v280 = vld [vmem:[%s269 + $0x18] sm:$0xff]
      %v281 = vld [vmem:[%s269 + $0x20] sm:$0xff]
      %v282 = vld [vmem:[%s269 + $0x28] sm:$0xff]
      %v283 = vld [vmem:[%s269 + $0x30] sm:$0xff]
      %v284 = vld [vmem:[%s269 + $0x38] sm:$0xff]
      %v285 = vld [vmem:[%s2] sm:$0xff]
      %v286 = vld [vmem:[%s2 + $0x8] sm:$0xff]
      %v287 = vld [vmem:[%s2 + $0x10] sm:$0xff]
      %v288 = vld [vmem:[%s2 + $0x18] sm:$0xff]
      %v289 = vld [vmem:[%s3] sm:$0x1]
      %v291 = vperm.slane %v289, 0
      %vm293 = vcmask 261120
      %v295 = vsel %vm293, %v277, 0
      %v298 = vsel %vm293, %v278, 0
      %v301 = vsel %vm293, %v279, 0
      %v304 = vsel %vm293, %v280, 0
      %v307 = vsel %vm293, %v281, 0
      %v310 = vsel %vm293, %v282, 0
      %v313 = vsel %vm293, %v283, 0
      %v316 = vsel %vm293, %v284, 0
      %318 = vmatpush.msra.mxu0 0.0
      %319 = vmatpush.msra.mxu0 0.0
      %320 = vmatpush.msra.mxu0 0.0
      %321 = vmatpush.msra.mxu0 0.0
      %322 = vmatpush.msra.mxu0 0.0
      %323 = vmatpush.msra.mxu0 0.0
      %324 = vmatpush.msra.mxu0 0.0
      %325 = vmatpush.msra.mxu0 0.0
      %326 = vmatpush.msra.mxu0 0.0
      %327 = vmatpush.msra.mxu0 0.0
      %328 = vmatpush.msra.mxu0 0.0
      %329 = vmatpush.msra.mxu0 0.0
      %330 = vmatpush.msra.mxu0 %v288
      %331 = vmatpush.msra.mxu0 %v287
      %332 = vmatpush.msra.mxu0 %v286
      %333 = vmatpush.msra.mxu0 %v285
      %334 = vmatmul.f32.gmra.mxu0 %v295
      %v335 = vpop.f32.mrf.mxu0
      %v336 = vadd.f32 %v291, %v335
      %337 = vmatmul.f32.gmra.mxu0 %v298
      %v338 = vpop.f32.mrf.mxu0
      %v339 = vadd.f32 %v291, %v338
      %340 = vmatmul.f32.gmra.mxu0 %v301
      %v341 = vpop.f32.mrf.mxu0
      %v342 = vadd.f32 %v291, %v341
      %343 = vmatmul.f32.gmra.mxu0 %v304
      %v344 = vpop.f32.mrf.mxu0
      %v345 = vadd.f32 %v291, %v344
      %346 = vmatmul.f32.gmra.mxu0 %v307
      %v347 = vpop.f32.mrf.mxu0
      %v348 = vadd.f32 %v291, %v347
      %349 = vmatmul.f32.gmra.mxu0 %v310
      %v350 = vpop.f32.mrf.mxu0
      %v351 = vadd.f32 %v291, %v350
      %352 = vmatmul.f32.gmra.mxu0 %v313
      %v353 = vpop.f32.mrf.mxu0
      %v354 = vadd.f32 %v291, %v353
      %355 = vmatmul.f32.gmra.mxu0 %v316
      %v356 = vpop.f32.mrf.mxu0
      %v357 = vadd.f32 %v291, %v356
      %358 = vdwg.mxu0
      %vm359 = vcmask 64512
      %v360 = vsel %vm359, %v336, -inf
      %361 = vmax.xlane.f32.xlu0 %v360
      %v362 = vpop.xlane.xlu0 %361
      %v363 = vsel %vm359, %v339, -inf
      %364 = vmax.xlane.f32.xlu0 %v363
      %v365 = vpop.xlane.xlu0 %364
      %v366 = vsel %vm359, %v342, -inf
      %367 = vmax.xlane.f32.xlu0 %v366
      %v368 = vpop.xlane.xlu0 %367
      %v369 = vsel %vm359, %v345, -inf
      %370 = vmax.xlane.f32.xlu0 %v369
      %v371 = vpop.xlane.xlu0 %370
      %v372 = vsel %vm359, %v348, -inf
      %373 = vmax.xlane.f32.xlu0 %v372
      %v374 = vpop.xlane.xlu0 %373
      %v375 = vsel %vm359, %v351, -inf
      %376 = vmax.xlane.f32.xlu0 %v375
      %v377 = vpop.xlane.xlu0 %376
      %v378 = vsel %vm359, %v354, -inf
      %379 = vmax.xlane.f32.xlu0 %v378
      %v380 = vpop.xlane.xlu0 %379
      %v381 = vsel %vm359, %v357, -inf
      %382 = vmax.xlane.f32.xlu0 %v381
      %v383 = vpop.xlane.xlu0 %382
      %v384 = vsub.f32 %v336, %v362
      %v385 = vsub.f32 %v339, %v365
      %v386 = vsub.f32 %v342, %v368
      %v387 = vsub.f32 %v345, %v371
      %v388 = vsub.f32 %v348, %v374
      %v389 = vsub.f32 %v351, %v377
      %v390 = vsub.f32 %v354, %v380
      %v391 = vsub.f32 %v357, %v383
      %v392 = vmul.f32 %v384, 1.442695
      %v393 = vpow.pop %v392
      %v394 = vmul.f32 %v385, 1.442695
      %v395 = vpow.pop %v394
      %v396 = vmul.f32 %v386, 1.442695
      %v397 = vpow.pop %v396
      %v398 = vmul.f32 %v387, 1.442695
      %v399 = vpow.pop %v398
      %v400 = vmul.f32 %v388, 1.442695
      %v401 = vpow.pop %v400
      %v402 = vmul.f32 %v389, 1.442695
      %v403 = vpow.pop %v402
      %v404 = vmul.f32 %v390, 1.442695
      %v405 = vpow.pop %v404
      %v406 = vmul.f32 %v391, 1.442695
      %v407 = vpow.pop %v406
      %v408 = vlaneseq
      %v409 = vshrl.u32 %v408, 7
      %v410 = vlaneseq
      %v411 = vand.u32 %v410, 127
      %v412 = vmul.u32 %v411, 4
      %vm413 = vcmp.ge.s32.totalorder %v409, %v412
      %v414 = vadd.s32 %v411, 1
      %v415 = vmul.u32 %v414, 4
      %vm416 = vcmp.lt.s32.totalorder %v409, %v415
      %vm417 = vmand %vm413, %vm416
      %v418 = vsel %vm417, 1, 0
      %v419 = vcvt.s32.f32 %v418
      %v420 = vmul.u32 %v409, 4
      %vm421 = vcmp.ge.s32.totalorder %v411, %v420
      %v422 = vadd.s32 %v409, 1
      %v423 = vmul.u32 %v422, 4
      %vm424 = vcmp.lt.s32.totalorder %v411, %v423
      %vm425 = vmand %vm421, %vm424
      %v426 = vsel %vm425, 1, 0
      %v427 = vcvt.s32.f32 %v426
      %v429 = vsel %vm359, %v393, 0
      %v432 = vsel %vm359, %v395, 0
      %v435 = vsel %vm359, %v397, 0
      %v438 = vsel %vm359, %v399, 0
      %v441 = vsel %vm359, %v401, 0
      %v444 = vsel %vm359, %v403, 0
      %v447 = vsel %vm359, %v405, 0
      %v450 = vsel %vm359, %v407, 0
      %452 = vmatpush.msra.mxu0 0.0
      %453 = vmatpush.msra.mxu0 0.0
      %454 = vmatpush.msra.mxu0 0.0
      %455 = vmatpush.msra.mxu0 0.0
      %456 = vmatpush.msra.mxu0 0.0
      %457 = vmatpush.msra.mxu0 0.0
      %458 = vmatpush.msra.mxu0 0.0
      %459 = vmatpush.msra.mxu0 0.0
      %460 = vmatpush.msra.mxu0 0.0
      %461 = vmatpush.msra.mxu0 0.0
      %462 = vmatpush.msra.mxu0 0.0
      %463 = vmatpush.msra.mxu0 0.0
      %464 = vmatpush.msra.mxu0 0.0
      %465 = vmatpush.msra.mxu0 0.0
      %466 = vmatpush.msra.mxu0 0.0
      %467 = vmatpush.msra.mxu0 %v419
      %468 = vmatmul.f32.gmra.mxu0 %v429
      %v469 = vpop.f32.mrf.mxu0
      %v470 = vadd.f32 0.0, %v469
      %471 = vmatmul.f32.gmra.mxu0 %v432
      %v472 = vpop.f32.mrf.mxu0
      %v473 = vadd.f32 0.0, %v472
      %474 = vmatmul.f32.gmra.mxu0 %v435
      %v475 = vpop.f32.mrf.mxu0
      %v476 = vadd.f32 0.0, %v475
      %477 = vmatmul.f32.gmra.mxu0 %v438
      %v478 = vpop.f32.mrf.mxu0
      %v479 = vadd.f32 0.0, %v478
      %480 = vmatmul.f32.gmra.mxu0 %v441
      %v481 = vpop.f32.mrf.mxu0
      %v482 = vadd.f32 0.0, %v481
      %483 = vmatmul.f32.gmra.mxu0 %v444
      %v484 = vpop.f32.mrf.mxu0
      %v485 = vadd.f32 0.0, %v484
      %486 = vmatmul.f32.gmra.mxu0 %v447
      %v487 = vpop.f32.mrf.mxu0
      %v488 = vadd.f32 0.0, %v487
      %489 = vmatmul.f32.gmra.mxu0 %v450
      %v490 = vpop.f32.mrf.mxu0
      %v491 = vadd.f32 0.0, %v490
      %492 = vdwg.mxu0
      %v493 = vrcp.pop %v470
      %v494 = vrcp.pop %v473
      %v495 = vrcp.pop %v476
      %v496 = vrcp.pop %v479
      %v497 = vrcp.pop %v482
      %v498 = vrcp.pop %v485
      %v499 = vrcp.pop %v488
      %v500 = vrcp.pop %v491
      %vm501 = vcmask 15360
      %v503 = vsel %vm501, %v493, 0
      %v506 = vsel %vm501, %v494, 0
      %v509 = vsel %vm501, %v495, 0
      %v512 = vsel %vm501, %v496, 0
      %v515 = vsel %vm501, %v497, 0
      %v518 = vsel %vm501, %v498, 0
      %v521 = vsel %vm501, %v499, 0
      %v524 = vsel %vm501, %v500, 0
      %vm526 = vcmask 1041408
      %v528 = vsel %vm526, %v427, 0
      %530 = vmatpush.msra.mxu0 0.0
      %531 = vmatpush.msra.mxu0 0.0
      %532 = vmatpush.msra.mxu0 0.0
      %533 = vmatpush.msra.mxu0 0.0
      %534 = vmatpush.msra.mxu0 0.0
      %535 = vmatpush.msra.mxu0 0.0
      %536 = vmatpush.msra.mxu0 0.0
      %537 = vmatpush.msra.mxu0 0.0
      %538 = vmatpush.msra.mxu0 0.0
      %539 = vmatpush.msra.mxu0 0.0
      %540 = vmatpush.msra.mxu0 0.0
      %541 = vmatpush.msra.mxu0 0.0
      %542 = vmatpush.msra.mxu0 0.0
      %543 = vmatpush.msra.mxu0 0.0
      %544 = vmatpush.msra.mxu0 0.0
      %545 = vmatpush.msra.mxu0 %v528
      %546 = vmatmul.f32.gmra.mxu0 %v503
      %v547 = vpop.f32.mrf.mxu0
      %v548 = vadd.f32 0.0, %v547
      %549 = vmatmul.f32.gmra.mxu0 %v506
      %v550 = vpop.f32.mrf.mxu0
      %v551 = vadd.f32 0.0, %v550
      %552 = vmatmul.f32.gmra.mxu0 %v509
      %v553 = vpop.f32.mrf.mxu0
      %v554 = vadd.f32 0.0, %v553
      %555 = vmatmul.f32.gmra.mxu0 %v512
      %v556 = vpop.f32.mrf.mxu0
      %v557 = vadd.f32 0.0, %v556
      %558 = vmatmul.f32.gmra.mxu0 %v515
      %v559 = vpop.f32.mrf.mxu0
      %v560 = vadd.f32 0.0, %v559
      %561 = vmatmul.f32.gmra.mxu0 %v518
      %v562 = vpop.f32.mrf.mxu0
      %v563 = vadd.f32 0.0, %v562
      %564 = vmatmul.f32.gmra.mxu0 %v521
      %v565 = vpop.f32.mrf.mxu0
      %v566 = vadd.f32 0.0, %v565
      %567 = vmatmul.f32.gmra.mxu0 %v524
      %v568 = vpop.f32.mrf.mxu0
      %v569 = vadd.f32 0.0, %v568
      %570 = vdwg.mxu0
      %v571 = vmul.f32 %v393, %v548
      %v572 = vmul.f32 %v395, %v551
      %v573 = vmul.f32 %v397, %v554
      %v574 = vmul.f32 %v399, %v557
      %v575 = vmul.f32 %v401, %v560
      %v576 = vmul.f32 %v403, %v563
      %v577 = vmul.f32 %v405, %v566
      %v578 = vmul.f32 %v407, %v569
      %v579 = vmul.u32 %v409, 16
      %vm580 = vcmp.ge.s32.totalorder %v411, %v579
      %v581 = vmul.u32 %v422, 16
      %vm582 = vcmp.lt.s32.totalorder %v411, %v581
      %vm583 = vmand %vm580, %vm582
      %v584 = vsel %vm583, 1, 0
      %v585 = vcvt.s32.f32 %v584
      %v587 = vsel %vm359, %v571, 0
      %v590 = vsel %vm359, %v572, 0
      %v593 = vsel %vm359, %v573, 0
      %v596 = vsel %vm359, %v574, 0
      %v599 = vsel %vm359, %v575, 0
      %v602 = vsel %vm359, %v576, 0
      %v605 = vsel %vm359, %v577, 0
      %v608 = vsel %vm359, %v578, 0
      %610 = vmatpush.msra.mxu0 0.0
      %611 = vmatpush.msra.mxu0 0.0
      %612 = vmatpush.msra.mxu0 0.0
      %613 = vmatpush.msra.mxu0 0.0
      %614 = vmatpush.msra.mxu0 0.0
      %615 = vmatpush.msra.mxu0 0.0
      %616 = vmatpush.msra.mxu0 0.0
      %617 = vmatpush.msra.mxu0 0.0
      %618 = vmatpush.msra.mxu0 0.0
      %619 = vmatpush.msra.mxu0 0.0
      %620 = vmatpush.msra.mxu0 0.0
      %621 = vmatpush.msra.mxu0 0.0
      %622 = vmatpush.msra.mxu0 0.0
      %623 = vmatpush.msra.mxu0 0.0
      %624 = vmatpush.msra.mxu0 0.0
      %625 = vmatpush.msra.mxu0 %v585
      %626 = vmatmul.f32.gmra.mxu0 %v587
      %v627 = vpop.f32.mrf.mxu0
      %v628 = vadd.f32 0.0, %v627
      %629 = vmatmul.f32.gmra.mxu0 %v590
      %v630 = vpop.f32.mrf.mxu0
      %v631 = vadd.f32 0.0, %v630
      %632 = vmatmul.f32.gmra.mxu0 %v593
      %v633 = vpop.f32.mrf.mxu0
      %v634 = vadd.f32 0.0, %v633
      %635 = vmatmul.f32.gmra.mxu0 %v596
      %v636 = vpop.f32.mrf.mxu0
      %v637 = vadd.f32 0.0, %v636
      %638 = vmatmul.f32.gmra.mxu0 %v599
      %v639 = vpop.f32.mrf.mxu0
      %v640 = vadd.f32 0.0, %v639
      %641 = vmatmul.f32.gmra.mxu0 %v602
      %v642 = vpop.f32.mrf.mxu0
      %v643 = vadd.f32 0.0, %v642
      %644 = vmatmul.f32.gmra.mxu0 %v605
      %v645 = vpop.f32.mrf.mxu0
      %v646 = vadd.f32 0.0, %v645
      %647 = vmatmul.f32.gmra.mxu0 %v608
      %v648 = vpop.f32.mrf.mxu0
      %v649 = vadd.f32 0.0, %v648
      %650 = vdwg.mxu0
      %v651 = vld [vmem:[%s263] sm:$0xff]
      %v652 = vld [vmem:[%s263 + $0x8] sm:$0xff]
      %v653 = vld [vmem:[%s263 + $0x10] sm:$0xff]
      %v654 = vld [vmem:[%s263 + $0x18] sm:$0xff]
      %v655 = vld [vmem:[%s263 + $0x20] sm:$0xff]
      %v656 = vld [vmem:[%s263 + $0x28] sm:$0xff]
      %v657 = vld [vmem:[%s263 + $0x30] sm:$0xff]
      %v658 = vld [vmem:[%s263 + $0x38] sm:$0xff]
      %v659 = vmul.f32 %v651, %v628
      %v660 = vmul.f32 %v652, %v631
      %v661 = vmul.f32 %v653, %v634
      %v662 = vmul.f32 %v654, %v637
      %v663 = vmul.f32 %v655, %v640
      %v664 = vmul.f32 %v656, %v643
      %v665 = vmul.f32 %v657, %v646
      %v666 = vmul.f32 %v658, %v649
      %v667 = vld [vmem:[%s4] sm:$0xff]
      %v668 = vld [vmem:[%s4 + $0x8] sm:$0xff]
      %v669 = vld [vmem:[%s4 + $0x10] sm:$0xff]
      %v670 = vld [vmem:[%s4 + $0x18] sm:$0xff]
      %v671 = vld [vmem:[%s4 + $0x20] sm:$0xff]
      %v672 = vld [vmem:[%s4 + $0x28] sm:$0xff]
      %v673 = vld [vmem:[%s4 + $0x30] sm:$0xff]
      %v674 = vld [vmem:[%s4 + $0x38] sm:$0xff]
      %v675 = vld [vmem:[%s4 + $0x40] sm:$0xff]
      %v676 = vld [vmem:[%s4 + $0x48] sm:$0xff]
      %v677 = vld [vmem:[%s4 + $0x50] sm:$0xff]
      %v678 = vld [vmem:[%s4 + $0x58] sm:$0xff]
      %v679 = vld [vmem:[%s4 + $0x60] sm:$0xff]
      %v680 = vld [vmem:[%s4 + $0x68] sm:$0xff]
      %v681 = vld [vmem:[%s4 + $0x70] sm:$0xff]
      %v682 = vld [vmem:[%s4 + $0x78] sm:$0xff]
      %v683 = vld [vmem:[%s5] sm:$0x1]
      %v685 = vperm.slane %v683, 0
      %687 = vmatpush.msra.mxu0 %v682
      %688 = vmatpush.msra.mxu0 %v681
      %689 = vmatpush.msra.mxu0 %v680
      %690 = vmatpush.msra.mxu0 %v679
      %691 = vmatpush.msra.mxu0 %v678
      %692 = vmatpush.msra.mxu0 %v677
      %693 = vmatpush.msra.mxu0 %v676
      %694 = vmatpush.msra.mxu0 %v675
      %695 = vmatpush.msra.mxu0 %v674
      %696 = vmatpush.msra.mxu0 %v673
      %697 = vmatpush.msra.mxu0 %v672
      %698 = vmatpush.msra.mxu0 %v671
      %699 = vmatpush.msra.mxu0 %v670
      %700 = vmatpush.msra.mxu0 %v669
      %701 = vmatpush.msra.mxu0 %v668
      %702 = vmatpush.msra.mxu0 %v667
      %703 = vmatmul.f32.gmra.mxu0 %v659
      %v704 = vpop.f32.mrf.mxu0
      %v705 = vadd.f32 %v685, %v704
      %706 = vmatmul.f32.gmra.mxu0 %v660
      %v707 = vpop.f32.mrf.mxu0
      %v708 = vadd.f32 %v685, %v707
      %709 = vmatmul.f32.gmra.mxu0 %v661
      %v710 = vpop.f32.mrf.mxu0
      %v711 = vadd.f32 %v685, %v710
      %712 = vmatmul.f32.gmra.mxu0 %v662
      %v713 = vpop.f32.mrf.mxu0
      %v714 = vadd.f32 %v685, %v713
      %715 = vmatmul.f32.gmra.mxu0 %v663
      %v716 = vpop.f32.mrf.mxu0
      %v717 = vadd.f32 %v685, %v716
      %718 = vmatmul.f32.gmra.mxu0 %v664
      %v719 = vpop.f32.mrf.mxu0
      %v720 = vadd.f32 %v685, %v719
      %721 = vmatmul.f32.gmra.mxu0 %v665
      %v722 = vpop.f32.mrf.mxu0
      %v723 = vadd.f32 %v685, %v722
      %724 = vmatmul.f32.gmra.mxu0 %v666
      %v725 = vpop.f32.mrf.mxu0
      %v726 = vadd.f32 %v685, %v725
      %727 = vdwg.mxu0
      %v728 = vadd.f32 %v277, %v705
      %v729 = vadd.f32 %v278, %v708
      %v730 = vadd.f32 %v279, %v711
      %v731 = vadd.f32 %v280, %v714
      %v732 = vadd.f32 %v281, %v717
      %v733 = vadd.f32 %v282, %v720
      %v734 = vadd.f32 %v283, %v723
      %v735 = vadd.f32 %v284, %v726
      %736 = vst.msk [vmem:[%s275] sm:$0xff] %vm293, %v728
      %737 = vst.msk [vmem:[%s275 + $0x8] sm:$0xff] %vm293, %v729
      %738 = vst.msk [vmem:[%s275 + $0x10] sm:$0xff] %vm293, %v730
      %739 = vst.msk [vmem:[%s275 + $0x18] sm:$0xff] %vm293, %v731
      %740 = vst.msk [vmem:[%s275 + $0x20] sm:$0xff] %vm293, %v732
      %741 = vst.msk [vmem:[%s275 + $0x28] sm:$0xff] %vm293, %v733
      %742 = vst.msk [vmem:[%s275 + $0x30] sm:$0xff] %vm293, %v734
      %743 = vst.msk [vmem:[%s275 + $0x38] sm:$0xff] %vm293, %v735
      %s744 = smul.u32 8, %s17
      %p745 = scmp.lt.s32.totalorder %s744, 31
      %s746 = scalar_select %p745, %s744, 31
      %s747 = smul.addr %s746, 8
      %s748 = scalar_lea.vmem %s6, %s747
      // Predicated region
      $region45: #{tpu_custom_call.1} parent=43 // pred_check
        %p749 = pneg %p171
      $region46: #{tpu_custom_call.1} parent=43 // pred_check_branch
        %751 = sbr.rel (%p749) target = $region48
      $region47: #{tpu_custom_call.1} parent=43 // pred_region
        %s752 = smul.u32 8, %s17
      $region48: #{tpu_custom_call.1} parent=43 // pred_fallthru
        _
    $region44: #{tpu_custom_call.1} parent=5 // pred_fallthru
      _
    %p753 = scmp.le.s32.totalorder 2, %s12
    // Predicated region
    $region49: #{tpu_custom_call.1} parent=5 // pred_check
      %p754 = pneg %p753
    $region50: #{tpu_custom_call.1} parent=5 // pred_check_branch
      %756 = sbr.rel (%p754) target = $region52
    $region51: #{tpu_custom_call.1} parent=5 // pred_region
      %s757 = ssub.s32 %s12, 2
      // Predicated region
      $region53: #{tpu_custom_call.1} parent=51 // pred_check
        %p758 = pneg %p177
      $region54: #{tpu_custom_call.1} parent=51 // pred_check_branch
        %760 = sbr.rel (%p758) target = $region56
      $region55: #{tpu_custom_call.1} parent=51 // pred_region
        %s761 = smul.u32 8, %s18
        %p762 = scmp.lt.s32.totalorder %s761, 31
        %s763 = scalar_select %p762, %s761, 31
        %s764 = smul.addr %s763, 8
        %s765 = scalar_lea.vmem %s6, %s764
      $region56: #{tpu_custom_call.1} parent=51 // pred_fallthru
        _
    $region52: #{tpu_custom_call.1} parent=5 // pred_fallthru
      _
  $region6: #{tpu_custom_call.1} parent=0 // loop_footer
    %s16 = sadd.s32 1, %s12
  $region7: #{tpu_custom_call.1} parent=0 // loop_footer_branch
    %11 = sbr.rel target = $region3
  $region8: #{tpu_custom_call.1} parent=0 // loop_exit
    _

</llo_original>
